<compile_context>
chip_gen: v6e
topology: v6e:2x2x1
jax: 0.10.0
libtpu: 0.0.40
codegen_flags: <defaults>
</compile_context>

<pallas_src>
import math

import jax
import jax.numpy as jnp
from jax.experimental import pallas as pl
from jax.experimental.pallas import tpu as pltpu

_MIB = 1024 * 1024
_LANE = 128
_ROW_PACK = 32          # covers f32 (8), bf16 (16), int8 (32) sublane packing
_MAX_WIDTH = 8192       # widest lane-dense slab searched for
_MAX_DMA_CHUNKS = 256   # static unroll cap for the HBM->HBM DMA loop


# --------------------------------------------------------------------------
# helpers
# --------------------------------------------------------------------------
def _resolve_size(numel, size):
    """Resolve a PyTorch-style size tuple (may contain a single -1)."""
    size = tuple(int(s) for s in size)
    if -1 in size:
        neg = size.index(-1)
        rest = 1
        for i, s in enumerate(size):
            if i != neg:
                rest *= s
        assert rest > 0 and numel % rest == 0, "shape incompatible with numel"
        size = size[:neg] + (numel // rest,) + size[neg + 1:]
    assert math.prod(size) == numel, "shape incompatible with numel"
    return size


def _pick_width(numel):
    """Widest lane-dense (multiple-of-128) last dim that divides numel exactly."""
    if numel % _LANE != 0:
        return None
    for k in range(_MAX_WIDTH // _LANE, 0, -1):   # 8192, 8064, ..., 128
        w = _LANE * k
        if numel % w == 0:
            return w
    return _LANE  # unreachable (128 always divides here)


def _pick_block_params(block_bytes=None):
    """Generation-aware block size + scoped-VMEM limit for the pipeline path."""
    try:
        vmem_cap = int(pltpu.get_tpu_info().vmem_capacity_bytes)
    except Exception:
        vmem_cap = 64 * _MIB  # conservative: v7x per-TensorCore VMEM
    if block_bytes is None:
        # Resident pipeline footprint ~= 2 double-buffers x (in + out) = 4x block.
        # Keep that under ~3/8 of physical VMEM:
        #   128 MiB chips (v5e/v6e) -> 8 MiB blocks, 64 MiB v7x -> 6 MiB blocks.
        block_bytes = min(8 * _MIB, max(1 * _MIB, (vmem_cap * 3 // 8) // 4))
    block_bytes = int(block_bytes)
    vmem_limit = 4 * block_bytes + 16 * _MIB        # resident + headroom
    vmem_limit = min(vmem_limit, vmem_cap - 4 * _MIB)
    vmem_limit = max(vmem_limit, 4 * block_bytes + 2 * _MIB)
    return block_bytes, int(vmem_limit)


# --------------------------------------------------------------------------
# path 1: lane-dense BlockSpec pipeline (numel % 128 == 0)
# --------------------------------------------------------------------------
def _copy_kernel(x_ref, o_ref):
    # Identity copy of one (block_rows, width) tile of the flattened stream.
    o_ref[...] = x_ref[...]


def _pipeline_copy(x, numel, *, block_bytes=None, width=None):
    if width is None:
        width = _pick_width(numel)
    assert width is not None and numel % width == 0
    rows = numel // width
    slab = jnp.reshape(x, (rows, width))

    block_bytes, vmem_limit = _pick_block_params(block_bytes)
    bytes_per_row = width * x.dtype.itemsize
    block_rows = max(1, block_bytes // bytes_per_row)
    if block_rows >= rows:
        block_rows = rows  # full extent: always layout-legal, single grid step
    else:
        # Multiple of 32 rows (packing-safe for f32 / bf16 / int8).
        block_rows = max(_ROW_PACK, (block_rows // _ROW_PACK) * _ROW_PACK)
        block_rows = min(block_rows, rows)

    grid = (pl.cdiv(rows, block_rows),)  # ragged last block is masked by Pallas

    copied = pl.pallas_call(
        _copy_kernel,
        out_shape=jax.ShapeDtypeStruct((rows, width), x.dtype),
        grid_spec=pltpu.PrefetchScalarGridSpec(
            num_scalar_prefetch=0,
            grid=grid,
            in_specs=[pl.BlockSpec((block_rows, width), lambda i: (i, 0))],
            out_specs=pl.BlockSpec((block_rows, width), lambda i: (i, 0)),
        ),
        # TODO(synk): on v7x, pltpu.CORE_PARALLEL (or core_map over 2 TCs) could
        # shard DMA issue across TensorCores; kept on "parallel" for portability.
        compiler_params=pltpu.CompilerParams(
            dimension_semantics=("parallel",),
            vmem_limit_bytes=int(vmem_limit),
        ),
    )(slab)
    return jnp.reshape(copied, (-1,))


# --------------------------------------------------------------------------
# path 2: direct HBM->HBM chunked DMA copy (any element count)
# --------------------------------------------------------------------------
def _dma_copy(x, numel, *, chunk_bytes=None, n_flight=4):
    flat = jnp.reshape(x, (numel,))
    itemsize = flat.dtype.itemsize
    if chunk_bytes is None:
        chunk_bytes = 8 * _MIB
    chunk_elems = max(1, int(chunk_bytes) // itemsize)
    if pl.cdiv(numel, chunk_elems) > _MAX_DMA_CHUNKS:
        chunk_elems = pl.cdiv(numel, _MAX_DMA_CHUNKS)

    # Static chunk table (offset, size): every DMA slice is fully static.
    chunks = []
    off = 0
    while off < numel:
        sz = min(chunk_elems, numel - off)
        chunks.append((off, sz))
        off += sz
    n_chunks = len(chunks)
    n_flight = max(1, min(int(n_flight), n_chunks))

    def kernel(x_hbm, o_hbm, sems):
        def desc(c, slot):
            s, n = chunks[c]
            return pltpu.make_async_copy(
                x_hbm.at[pl.ds(s, n)], o_hbm.at[pl.ds(s, n)], sems.at[slot])

        # Prime n_flight DMAs, then wait-and-refill (unrolled, static offsets).
        for c in range(n_flight):
            desc(c, c).start()
        for c in range(n_chunks):
            slot = c % n_flight
            desc(c, slot).wait()
            nxt = c + n_flight
            if nxt < n_chunks:
                desc(nxt, slot).start()

    copied = pl.pallas_call(
        kernel,
        out_shape=jax.ShapeDtypeStruct((numel,), flat.dtype),
        in_specs=[pl.BlockSpec(memory_space=pl.ANY)],
        out_specs=pl.BlockSpec(memory_space=pl.ANY),
        scratch_shapes=[pltpu.SemaphoreType.DMA((n_flight,))],
    )(flat)
    return copied


# --------------------------------------------------------------------------
# public wrapper
# --------------------------------------------------------------------------
def _materialize_copy(x, numel, *, impl="auto", block_bytes=None, width=None,
                      chunk_bytes=None, n_flight=4):
    if impl == "auto":
        impl = "pipeline" if (numel % _LANE == 0) else "dma"
    if impl == "pipeline":
        return _pipeline_copy(x, numel, block_bytes=block_bytes, width=width)
    if impl == "dma":
        return _dma_copy(x, numel, chunk_bytes=chunk_bytes, n_flight=n_flight)
    raise ValueError(f"unknown impl: {impl!r}")


def view_pallas(x, size, force_copy=False, **copy_kwargs):
    numel = math.prod(x.shape)
    out_shape = _resolve_size(numel, size)
    if not force_copy or numel == 0:
        # torch.view is metadata-only on contiguous storage; row-major reshape
        # is the exact equivalent and free under XLA.
        return jnp.reshape(x, out_shape)
    flat = _materialize_copy(x, numel, **copy_kwargs)
    return jnp.reshape(flat, out_shape)


class ViewPallas:
    """Mirror of the PyTorch `View` module (no parameters)."""

    def __init__(self, size, force_copy=False):
        self.size = size
        self.force_copy = force_copy

    def __call__(self, tensor):
        return view_pallas(tensor, self.size, force_copy=self.force_copy)


# --------------------------------------------------------------------------
# self-test
# --------------------------------------------------------------------------
if __name__ == "__main__":
    key = jax.random.PRNGKey(0)

    # 1) Module-shaped input: (batch=2, channels=4, 16, 16) -> (2, -1).
    x = jax.random.normal(key, (2, 4, 16, 16), dtype=jnp.float32)
    ref = jnp.reshape(x, (2, -1))
    mod = ViewPallas((2, -1))
    y_fast = jax.block_until_ready(mod(x))                               # metadata-only
    y_copy = jax.block_until_ready(view_pallas(x, (2, -1), force_copy=True))
    assert y_fast.shape == (2, 1024) and y_copy.shape == (2, 1024)
    assert y_fast.dtype == x.dtype and y_copy.dtype == x.dtype
    assert bool(jnp.all(y_fast == ref)) and bool(jnp.all(y_copy == ref))

    # 2) Pipeline path: multi-step grid with a ragged last block
    #    (rows=136, block_rows=32 -> 5 grid steps, last block 8 rows masked).
    x2 = jax.random.normal(jax.random.PRNGKey(0), (1, 136, 512), dtype=jnp.float32)
    y2 = jax.block_until_ready(
        view_pallas(x2, (-1, 512), force_copy=True,
                    width=512, block_bytes=32 * 512 * 4))
    assert y2.shape == (136, 512) and y2.dtype == x2.dtype
    assert bool(jnp.all(y2 == jnp.reshape(x2, (-1, 512))))

    # 3) bf16 sanity check (sublane packing / full-extent block).
    x3 = jax.random.normal(jax.random.PRNGKey(0), (2, 8, 32), dtype=jnp.bfloat16)
    y3 = jax.block_until_ready(view_pallas(x3, (-1, 64), force_copy=True))
    assert bool(jnp.all(y3 == jnp.reshape(x3, (-1, 64))))

    # 4) numel NOT divisible by 128 -> HBM->HBM DMA path
    #    (small chunks force multi-chunk pipelining + ragged tail chunk).
    x4 = jax.random.normal(jax.random.PRNGKey(0), (2, 5, 9, 7), dtype=jnp.float32)
    y4 = jax.block_until_ready(
        view_pallas(x4, (2, -1), force_copy=True, chunk_bytes=512, n_flight=3))
    assert y4.shape == (2, 315) and y4.dtype == x4.dtype
    assert bool(jnp.all(y4 == jnp.reshape(x4, (2, -1))))

    # 5) DMA impl forced on a 128-divisible shape (single-chunk case).
    y5 = jax.block_until_ready(view_pallas(x, (2, -1), force_copy=True, impl="dma"))
    assert bool(jnp.all(y5 == ref))

    print("KERNEL_OK")
</pallas_src>

<mosaic_0001>
module attributes {stable_mosaic.version = 11 : i64} {
  func.func @_copy_kernel(%arg0: i32, %arg1: memref<1x2048xf32, #tpu.memory_space<vmem>>, %arg2: memref<1x2048xf32, #tpu.memory_space<vmem>>) attributes {dimension_semantics = [#tpu.dimension_semantics<parallel>], iteration_bounds = array<i64: 1>, scalar_prefetch = 0 : i64, scratch_operands = 0 : i64, tpu.core_type = #tpu.core_type<tc>, window_params = [{transform_indices = @transform_0, window_bounds = array<i64: 1, 2048>}, {transform_indices = @transform_1, window_bounds = array<i64: 1, 2048>}]} {
    %c0 = arith.constant 0 : index
    %c0_0 = arith.constant 0 : index
    %0 = vector.load %arg1[%c0, %c0_0] : memref<1x2048xf32, #tpu.memory_space<vmem>>, vector<1x2048xf32>
    %c0_1 = arith.constant 0 : index
    %c0_2 = arith.constant 0 : index
    %1 = vector.load %arg2[%c0_1, %c0_2] : memref<1x2048xf32, #tpu.memory_space<vmem>>, vector<1x2048xf32>
    tpu.vector_store %arg2[%c0_1, %c0_2], %0 {strides = array<i32>} : memref<1x2048xf32, #tpu.memory_space<vmem>>, vector<1x2048xf32>,
    return
  }
  func.func @transform_0(%arg0: i32) -> (i32, i32) {
    %c0_i32 = arith.constant 0 : i32
    %c0_i32_0 = arith.constant 0 : i32
    return %arg0, %c0_i32 : i32, i32
  }
  func.func @transform_1(%arg0: i32) -> (i32, i32) {
    %c0_i32 = arith.constant 0 : i32
    %c0_i32_0 = arith.constant 0 : i32
    return %arg0, %c0_i32 : i32, i32
  }
}

</mosaic_0001>

<llo_original>
// kernel: tpu_custom_call.1
$region0: #{tpu_custom_call.1}
  #allocation0 [shape = 'u32[]', space=smem, size = 0x4, offset = 0x4, fixed_abs, tag = 'smem constant byte address 0x4 - core index']
  #allocation1 [shape = 'u32[144,128]{1,0:T(1,128)}', space=vmem, size = 0x12000, scoped, tag = 'internal scratch']
  %s0 = inlined_call_operand.hbm [shape: f32[1,2048], index: 0, kind: input, shape index: {}]
  %s1 = inlined_call_operand.hbm [shape: f32[1,2048], index: 1, kind: output, shape index: {}]
  %s2 = sld [smem:[#allocation0]]
  $region18: #{tpu_custom_call.1} parent=0
    _
  %s4 = ssub.s32 1, %s2
  %s5 = scalar_select 0, %s4, %s2
  $region1: #{tpu_custom_call.1} parent=0
    #allocation2 [shape = 'u8[8192]{0}', space=vmem, size = 0x2000, scoped, tag = 'input window, operand 0, single buffered']
    #allocation3 [shape = 's32[1]{0}', space=sflag, size = 0x4, scoped, tag = 'scoped memory for tpu_custom_call.1']
    #allocation4 [shape = 's32[1]{0}', space=sflag, size = 0x4, scoped, tag = 'scoped memory for tpu_custom_call.1']
    #allocation5 [shape = 'u8[8192]{0}', space=vmem, size = 0x2000, scoped, tag = 'output window, operand 0, single buffered']
    %6 = vsyncpa [#allocation3], 0
    %7 = vsyncpa [#allocation4], 0
    // Predicated region
    $region2: #{tpu_custom_call.1} parent=1 // pred_check
      _
    $region3: #{tpu_custom_call.1} parent=1 // pred_check_branch
      %9 = sbr.rel (0) target = $region5
    $region4: #{tpu_custom_call.1} parent=1 // pred_region
      %s11 = ssub.s32 256, 256
      %12 = vsyncadd [#allocation3], %s11
      %s14 = sshll.u32 [#allocation2], 4
      %s15 = int_to_ptr.vmem [resolvable:$true] %s14
      %17 = dma.hbm_to_vmem [thread:$0]  %s0, 256, %s15, [#allocation3]
    $region5: #{tpu_custom_call.1} parent=1 // pred_fallthru
      _
    // Predicated region
    $region6: #{tpu_custom_call.1} parent=1 // pred_check
      _
    $region7: #{tpu_custom_call.1} parent=1 // pred_check_branch
      %19 = sbr.rel (0) target = $region9
    $region8: #{tpu_custom_call.1} parent=1 // pred_region
      %20 = dma.done [#allocation3], 256
    $region9: #{tpu_custom_call.1} parent=1 // pred_fallthru
      _
    %v21 = vld [vmem:[#allocation2] sm:$0xff]
    %v22 = vld [vmem:[#allocation2 + $0x8] sm:$0xff]
    %23 = vst [vmem:[#allocation5] sm:$0xff] %v21
    %24 = vst [vmem:[#allocation5 + $0x8] sm:$0xff] %v22
    // Predicated region
    $region10: #{tpu_custom_call.1} parent=1 // pred_check
      _
    $region11: #{tpu_custom_call.1} parent=1 // pred_check_branch
      %26 = sbr.rel (0) target = $region13
    $region12: #{tpu_custom_call.1} parent=1 // pred_region
      %s28 = ssub.s32 256, 256
      %29 = vsyncadd [#allocation4], %s28
      %s31 = sshll.u32 [#allocation5], 4
      %s32 = int_to_ptr.vmem [resolvable:$true] %s31
      %34 = dma.vmem_to_hbm [thread:$0]  %s32, 256, %s1, [#allocation4]
    $region13: #{tpu_custom_call.1} parent=1 // pred_fallthru
      _
    // Predicated region
    $region14: #{tpu_custom_call.1} parent=1 // pred_check
      _
    $region15: #{tpu_custom_call.1} parent=1 // pred_check_branch
      %36 = sbr.rel (0) target = $region17
    $region16: #{tpu_custom_call.1} parent=1 // pred_region
      %37 = dma.done [#allocation4], 256
    $region17: #{tpu_custom_call.1} parent=1 // pred_fallthru
      _
    %38 = vsyncpa [#allocation3], 1
    %39 = vsyncpa [#allocation4], 1

</llo_original>
